<compile_context>
chip_gen: v5e
topology: v5e:2x2
jax: 0.10.0
libtpu: 0.0.40
codegen_flags: <defaults>
</compile_context>

<pallas_src>
import functools

import jax
import jax.numpy as jnp
from jax.experimental import pallas as pl
from jax.experimental.pallas import tpu as pltpu


def _round_up(n, m):
    return ((n + m - 1) // m) * m


# ----------------------------------------------------------------------------
# Fused kernel.
#   x_ref : (seq_len * batch_p, input_size)  time-major, batch padded to 8
#   p_ref : (R, LW) packed parameter slab (h0, W_ih0, W_hh0, b0,
#           per-deep-layer W_ih/W_hh/b, W_out, b_out), every piece row-padded
#           to a multiple of 8 and lane-padded to LW = max(hidden, out).
#   out_ref: (batch_p, output_size)
# ----------------------------------------------------------------------------
def fused_rnn_kernel(cfg, x_ref, p_ref, out_ref):
    (num_layers, seq_len, batch, in_dim, hidden, out_dim,
     h0_off, wih0_off, whh0_off, b0_off, deep_offs, wout_off, bout_off) = cfg

    f32 = jnp.float32

    # ---- One-shot loads of all (tiny) parameters from the packed slab.
    wih0 = p_ref[wih0_off:wih0_off + in_dim, :hidden]
    whh0 = p_ref[whh0_off:whh0_off + hidden, :hidden]
    b0 = p_ref[b0_off:b0_off + 1, :hidden]          # b_ih0 + b_hh0, pre-summed
    deep_w = []
    for l in range(1, num_layers):
        wih_off, whh_off, b_off = deep_offs[l - 1]
        deep_w.append((p_ref[wih_off:wih_off + hidden, :hidden],
                       p_ref[whh_off:whh_off + hidden, :hidden],
                       p_ref[b_off:b_off + 1, :hidden]))

    # ---- Hoisted layer-0 input-to-hidden projection for ALL timesteps:
    # a single MXU push with the combined bias folded in. Kept as SSA vregs
    # (no VMEM scratch round-trip).
    xh = jnp.dot(x_ref[...].astype(f32), wih0, preferred_element_type=f32) + b0

    # Initial hidden states, loop-carried SSA values (never touch HBM).
    hs = [p_ref[h0_off + l * batch:h0_off + (l + 1) * batch, :hidden]
          for l in range(num_layers)]

    # ---- Fully unrolled time recurrence; all slice indices are static.
    for t in range(seq_len):
        # Independent recurrent matmuls hoisted so their MXU pushes can
        # issue back-to-back and overlap the dependent chain below.
        recs = [jnp.dot(hs[0], whh0, preferred_element_type=f32)]
        for l in range(1, num_layers):
            _, whh_l, _ = deep_w[l - 1]
            recs.append(jnp.dot(hs[l], whh_l, preferred_element_type=f32))

        # Layer 0: only the add + tanh remain on the critical path.
        new_hs = [jnp.tanh(xh[t * batch:(t + 1) * batch, :] + recs[0])]
        # Layers 1..L-1: un-fused two-dot form; bias folded into the
        # already-available recurrent term, off the critical path.
        for l in range(1, num_layers):
            wih_l, _, b_l = deep_w[l - 1]
            pre = jnp.dot(new_hs[l - 1], wih_l, preferred_element_type=f32)
            new_hs.append(jnp.tanh(pre + (recs[l] + b_l)))
        hs = new_hs

    # ---- Fused linear readout of the top layer's final hidden state.
    w_out = p_ref[wout_off:wout_off + hidden, :out_dim]
    b_out = p_ref[bout_off:bout_off + 1, :out_dim]
    out_ref[...] = (jnp.dot(hs[-1], w_out, preferred_element_type=f32)
                    + b_out).astype(out_ref.dtype)


def cmapss_rnn_forward(x, param_slab, cfg):
    """x: (seq_len, batch, input_size) -> (batch, output_size)."""
    num_layers, seq_len, batch_p, in_dim, hidden, out_dim = cfg[:6]
    seq, batch, _ = x.shape
    assert seq == seq_len
    if batch < batch_p:                       # keep sublane-tile alignment
        x = jnp.pad(x, ((0, 0), (0, batch_p - batch), (0, 0)))
    x2 = x.reshape(seq_len * batch_p, in_dim)

    vmem = pl.BlockSpec(memory_space=pltpu.MemorySpace.VMEM)
    out = pl.pallas_call(
        functools.partial(fused_rnn_kernel, cfg),
        out_shape=jax.ShapeDtypeStruct((batch_p, out_dim), jnp.float32),
        in_specs=[vmem, vmem],
        out_specs=vmem,
    )(x2, param_slab)
    return out[:batch]


# ----------------------------------------------------------------------------
# Module wrapper
# ----------------------------------------------------------------------------
class CMAPSSRNNRegressor:
    def __init__(self, input_size, num_layers, hidden_size, output_size,
                 batch_size, key):
        self.input_size = input_size
        self.num_layers = num_layers
        self.hidden_size = hidden_size
        self.output_size = output_size
        self.batch_size = batch_size
        self.batch_p = _round_up(batch_size, 8)

        # hidden_state: (num_layers, batch, hidden). The reference module's
        # forward() is a stub; as before we use this as h0 each call.
        self.hidden_state = jnp.zeros((num_layers, batch_size, hidden_size),
                                      jnp.float32)

        # PyTorch-style U(-k, k) init, k = 1/sqrt(H). Biases pre-summed.
        k = 1.0 / float(hidden_size) ** 0.5
        key, k1, k2, k3, k4 = jax.random.split(key, 5)
        self.w_ih0 = jax.random.uniform(k1, (input_size, hidden_size),
                                        jnp.float32, -k, k)
        self.w_hh0 = jax.random.uniform(k2, (hidden_size, hidden_size),
                                        jnp.float32, -k, k)
        self.b0 = (jax.random.uniform(k3, (1, hidden_size), jnp.float32, -k, k)
                   + jax.random.uniform(k4, (1, hidden_size), jnp.float32,
                                        -k, k))

        self.deep_raw = []
        for _ in range(1, num_layers):
            key, k1, k2, k3, k4 = jax.random.split(key, 5)
            w_ih = jax.random.uniform(k1, (hidden_size, hidden_size),
                                      jnp.float32, -k, k)
            w_hh = jax.random.uniform(k2, (hidden_size, hidden_size),
                                      jnp.float32, -k, k)
            b = (jax.random.uniform(k3, (1, hidden_size), jnp.float32, -k, k)
                 + jax.random.uniform(k4, (1, hidden_size), jnp.float32,
                                      -k, k))
            self.deep_raw.append((w_ih, w_hh, b))

        key, k5, k6 = jax.random.split(key, 3)
        self.w_out = jax.random.uniform(k5, (hidden_size, output_size),
                                        jnp.float32, -k, k)
        self.b_out = jax.random.uniform(k6, (1, output_size), jnp.float32,
                                        -k, k)

        # ---- Pack every parameter into one padded slab (single DMA/call).
        lane_w = max(hidden_size, output_size)
        rows = []
        cur = 0

        def _add(arr2d):
            nonlocal cur
            r, c = arr2d.shape
            rp = _round_up(r, 8)
            rows.append(jnp.pad(arr2d, ((0, rp - r), (0, lane_w - c))))
            off = cur
            cur += rp
            return off

        h0_pad = jnp.pad(self.hidden_state,
                         ((0, 0), (0, self.batch_p - batch_size), (0, 0)))
        h0_off = _add(h0_pad.reshape(num_layers * self.batch_p, hidden_size))
        wih0_off = _add(self.w_ih0)
        whh0_off = _add(self.w_hh0)
        b0_off = _add(self.b0)
        deep_offs = []
        for (w_ih, w_hh, b) in self.deep_raw:
            deep_offs.append((_add(w_ih), _add(w_hh), _add(b)))
        wout_off = _add(self.w_out)
        bout_off = _add(self.b_out)

        self.param_slab = jnp.concatenate(rows, axis=0)
        self._offs = (h0_off, wih0_off, whh0_off, b0_off, tuple(deep_offs),
                      wout_off, bout_off)

    def __call__(self, x):
        """x: (seq_len, batch, input_size) -> (batch, output_size)."""
        seq_len = x.shape[0]
        cfg = (self.num_layers, seq_len, self.batch_p, self.input_size,
               self.hidden_size, self.output_size) + self._offs
        return cmapss_rnn_forward(x, self.param_slab, cfg)

    # Pure-JAX reference (same math, no Pallas) for correctness checking.
    def reference(self, x):
        seq_len = x.shape[0]
        hs = [self.hidden_state[l] for l in range(self.num_layers)]
        for t in range(seq_len):
            inp = x[t]
            new_hs = [jnp.tanh(inp @ self.w_ih0 + hs[0] @ self.w_hh0
                               + self.b0)]
            for l in range(1, self.num_layers):
                w_ih, w_hh, b = self.deep_raw[l - 1]
                new_hs.append(jnp.tanh(new_hs[l - 1] @ w_ih + hs[l] @ w_hh
                                       + b))
            hs = new_hs
        return hs[-1] @ self.w_out + self.b_out


if __name__ == "__main__":
    key = jax.random.PRNGKey(0)

    batch = 8
    seq_len = 12
    input_size = 24     # CMAPSS sensor/feature count
    hidden_size = 32
    num_layers = 2
    output_size = 1     # RUL regression target

    key, kx, kp = jax.random.split(key, 3)
    x = jax.random.normal(kx, (seq_len, batch, input_size), jnp.float32)

    model = CMAPSSRNNRegressor(input_size, num_layers, hidden_size,
                               output_size, batch, kp)
    y = model(x)
    jax.block_until_ready(y)
    assert y.shape == (batch, output_size)

    y_ref = model.reference(x)
    assert jnp.allclose(y, y_ref, atol=1e-3, rtol=1e-3), (
        "Pallas output diverges from reference")

    print("KERNEL_OK")
</pallas_src>

<mosaic_0001>
module attributes {stable_mosaic.version = 11 : i64} {
  func.func @fused_rnn_kernel(%arg0: memref<96x24xf32, #tpu.memory_space<vmem>>, %arg1: memref<192x32xf32, #tpu.memory_space<vmem>>, %arg2: memref<8x1xf32, #tpu.memory_space<vmem>>) attributes {dimension_semantics = [], scalar_prefetch = 0 : i64, scratch_operands = 0 : i64, tpu.core_type = #tpu.core_type<tc>} {
    %c16 = arith.constant 16 : index
    %c0 = arith.constant 0 : index
    %0 = vector.load %arg1[%c16, %c0] : memref<192x32xf32, #tpu.memory_space<vmem>>, vector<24x32xf32>
    %c40 = arith.constant 40 : index
    %c0_0 = arith.constant 0 : index
    %1 = vector.load %arg1[%c40, %c0_0] : memref<192x32xf32, #tpu.memory_space<vmem>>, vector<32x32xf32>
    %c72 = arith.constant 72 : index
    %c0_1 = arith.constant 0 : index
    %2 = vector.load %arg1[%c72, %c0_1] : memref<192x32xf32, #tpu.memory_space<vmem>>, vector<1x32xf32>
    %c80 = arith.constant 80 : index
    %c0_2 = arith.constant 0 : index
    %3 = vector.load %arg1[%c80, %c0_2] : memref<192x32xf32, #tpu.memory_space<vmem>>, vector<32x32xf32>
    %c112 = arith.constant 112 : index
    %c0_3 = arith.constant 0 : index
    %4 = vector.load %arg1[%c112, %c0_3] : memref<192x32xf32, #tpu.memory_space<vmem>>, vector<32x32xf32>
    %c144 = arith.constant 144 : index
    %c0_4 = arith.constant 0 : index
    %5 = vector.load %arg1[%c144, %c0_4] : memref<192x32xf32, #tpu.memory_space<vmem>>, vector<1x32xf32>
    %c0_5 = arith.constant 0 : index
    %c0_6 = arith.constant 0 : index
    %6 = vector.load %arg0[%c0_5, %c0_6] : memref<96x24xf32, #tpu.memory_space<vmem>>, vector<96x24xf32>
    %cst = arith.constant dense<0.000000e+00> : vector<96x32xf32>
    %7 = tpu.matmul %6, %0, %cst {dimension_numbers = #tpu.dot_dimension_numbers<[1], [0], [0], [1], [0, 0, 1, 1], [], []>} : vector<96x24xf32>, vector<24x32xf32>, vector<96x32xf32> -> vector<96x32xf32>
    %8 = vector.broadcast %2 : vector<1x32xf32> to vector<96x32xf32>
    %9 = arith.addf %7, %8 : vector<96x32xf32>
    %c0_7 = arith.constant 0 : index
    %c0_8 = arith.constant 0 : index
    %10 = vector.load %arg1[%c0_7, %c0_8] : memref<192x32xf32, #tpu.memory_space<vmem>>, vector<8x32xf32>
    %c8 = arith.constant 8 : index
    %c0_9 = arith.constant 0 : index
    %11 = vector.load %arg1[%c8, %c0_9] : memref<192x32xf32, #tpu.memory_space<vmem>>, vector<8x32xf32>
    %cst_10 = arith.constant dense<0.000000e+00> : vector<8x32xf32>
    %12 = tpu.matmul %10, %1, %cst_10 {dimension_numbers = #tpu.dot_dimension_numbers<[1], [0], [0], [1], [0, 0, 1, 1], [], []>} : vector<8x32xf32>, vector<32x32xf32>, vector<8x32xf32> -> vector<8x32xf32>
    %cst_11 = arith.constant dense<0.000000e+00> : vector<8x32xf32>
    %13 = tpu.matmul %11, %4, %cst_11 {dimension_numbers = #tpu.dot_dimension_numbers<[1], [0], [0], [1], [0, 0, 1, 1], [], []>} : vector<8x32xf32>, vector<32x32xf32>, vector<8x32xf32> -> vector<8x32xf32>
    %14 = vector.extract_strided_slice %9 {offsets = [0, 0], sizes = [8, 32], strides = [1, 1]} : vector<96x32xf32> to vector<8x32xf32>
    %15 = arith.addf %14, %12 : vector<8x32xf32>
    %16 = math.tanh %15 : vector<8x32xf32>
    %cst_12 = arith.constant dense<0.000000e+00> : vector<8x32xf32>
    %17 = tpu.matmul %16, %3, %cst_12 {dimension_numbers = #tpu.dot_dimension_numbers<[1], [0], [0], [1], [0, 0, 1, 1], [], []>} : vector<8x32xf32>, vector<32x32xf32>, vector<8x32xf32> -> vector<8x32xf32>
    %18 = vector.broadcast %5 : vector<1x32xf32> to vector<8x32xf32>
    %19 = arith.addf %13, %18 : vector<8x32xf32>
    %20 = arith.addf %17, %19 : vector<8x32xf32>
    %21 = math.tanh %20 : vector<8x32xf32>
    %cst_13 = arith.constant dense<0.000000e+00> : vector<8x32xf32>
    %22 = tpu.matmul %16, %1, %cst_13 {dimension_numbers = #tpu.dot_dimension_numbers<[1], [0], [0], [1], [0, 0, 1, 1], [], []>} : vector<8x32xf32>, vector<32x32xf32>, vector<8x32xf32> -> vector<8x32xf32>
    %cst_14 = arith.constant dense<0.000000e+00> : vector<8x32xf32>
    %23 = tpu.matmul %21, %4, %cst_14 {dimension_numbers = #tpu.dot_dimension_numbers<[1], [0], [0], [1], [0, 0, 1, 1], [], []>} : vector<8x32xf32>, vector<32x32xf32>, vector<8x32xf32> -> vector<8x32xf32>
    %24 = vector.extract_strided_slice %9 {offsets = [8, 0], sizes = [8, 32], strides = [1, 1]} : vector<96x32xf32> to vector<8x32xf32>
    %25 = arith.addf %24, %22 : vector<8x32xf32>
    %26 = math.tanh %25 : vector<8x32xf32>
    %cst_15 = arith.constant dense<0.000000e+00> : vector<8x32xf32>
    %27 = tpu.matmul %26, %3, %cst_15 {dimension_numbers = #tpu.dot_dimension_numbers<[1], [0], [0], [1], [0, 0, 1, 1], [], []>} : vector<8x32xf32>, vector<32x32xf32>, vector<8x32xf32> -> vector<8x32xf32>
    %28 = vector.broadcast %5 : vector<1x32xf32> to vector<8x32xf32>
    %29 = arith.addf %23, %28 : vector<8x32xf32>
    %30 = arith.addf %27, %29 : vector<8x32xf32>
    %31 = math.tanh %30 : vector<8x32xf32>
    %cst_16 = arith.constant dense<0.000000e+00> : vector<8x32xf32>
    %32 = tpu.matmul %26, %1, %cst_16 {dimension_numbers = #tpu.dot_dimension_numbers<[1], [0], [0], [1], [0, 0, 1, 1], [], []>} : vector<8x32xf32>, vector<32x32xf32>, vector<8x32xf32> -> vector<8x32xf32>
    %cst_17 = arith.constant dense<0.000000e+00> : vector<8x32xf32>
    %33 = tpu.matmul %31, %4, %cst_17 {dimension_numbers = #tpu.dot_dimension_numbers<[1], [0], [0], [1], [0, 0, 1, 1], [], []>} : vector<8x32xf32>, vector<32x32xf32>, vector<8x32xf32> -> vector<8x32xf32>
    %34 = vector.extract_strided_slice %9 {offsets = [16, 0], sizes = [8, 32], strides = [1, 1]} : vector<96x32xf32> to vector<8x32xf32>
    %35 = arith.addf %34, %32 : vector<8x32xf32>
    %36 = math.tanh %35 : vector<8x32xf32>
    %cst_18 = arith.constant dense<0.000000e+00> : vector<8x32xf32>
    %37 = tpu.matmul %36, %3, %cst_18 {dimension_numbers = #tpu.dot_dimension_numbers<[1], [0], [0], [1], [0, 0, 1, 1], [], []>} : vector<8x32xf32>, vector<32x32xf32>, vector<8x32xf32> -> vector<8x32xf32>
    %38 = vector.broadcast %5 : vector<1x32xf32> to vector<8x32xf32>
    %39 = arith.addf %33, %38 : vector<8x32xf32>
    %40 = arith.addf %37, %39 : vector<8x32xf32>
    %41 = math.tanh %40 : vector<8x32xf32>
    %cst_19 = arith.constant dense<0.000000e+00> : vector<8x32xf32>
    %42 = tpu.matmul %36, %1, %cst_19 {dimension_numbers = #tpu.dot_dimension_numbers<[1], [0], [0], [1], [0, 0, 1, 1], [], []>} : vector<8x32xf32>, vector<32x32xf32>, vector<8x32xf32> -> vector<8x32xf32>
    %cst_20 = arith.constant dense<0.000000e+00> : vector<8x32xf32>
    %43 = tpu.matmul %41, %4, %cst_20 {dimension_numbers = #tpu.dot_dimension_numbers<[1], [0], [0], [1], [0, 0, 1, 1], [], []>} : vector<8x32xf32>, vector<32x32xf32>, vector<8x32xf32> -> vector<8x32xf32>
    %44 = vector.extract_strided_slice %9 {offsets = [24, 0], sizes = [8, 32], strides = [1, 1]} : vector<96x32xf32> to vector<8x32xf32>
    %45 = arith.addf %44, %42 : vector<8x32xf32>
    %46 = math.tanh %45 : vector<8x32xf32>
    %cst_21 = arith.constant dense<0.000000e+00> : vector<8x32xf32>
    %47 = tpu.matmul %46, %3, %cst_21 {dimension_numbers = #tpu.dot_dimension_numbers<[1], [0], [0], [1], [0, 0, 1, 1], [], []>} : vector<8x32xf32>, vector<32x32xf32>, vector<8x32xf32> -> vector<8x32xf32>
    %48 = vector.broadcast %5 : vector<1x32xf32> to vector<8x32xf32>
    %49 = arith.addf %43, %48 : vector<8x32xf32>
    %50 = arith.addf %47, %49 : vector<8x32xf32>
    %51 = math.tanh %50 : vector<8x32xf32>
    %cst_22 = arith.constant dense<0.000000e+00> : vector<8x32xf32>
    %52 = tpu.matmul %46, %1, %cst_22 {dimension_numbers = #tpu.dot_dimension_numbers<[1], [0], [0], [1], [0, 0, 1, 1], [], []>} : vector<8x32xf32>, vector<32x32xf32>, vector<8x32xf32> -> vector<8x32xf32>
    %cst_23 = arith.constant dense<0.000000e+00> : vector<8x32xf32>
    %53 = tpu.matmul %51, %4, %cst_23 {dimension_numbers = #tpu.dot_dimension_numbers<[1], [0], [0], [1], [0, 0, 1, 1], [], []>} : vector<8x32xf32>, vector<32x32xf32>, vector<8x32xf32> -> vector<8x32xf32>
    %54 = vector.extract_strided_slice %9 {offsets = [32, 0], sizes = [8, 32], strides = [1, 1]} : vector<96x32xf32> to vector<8x32xf32>
    %55 = arith.addf %54, %52 : vector<8x32xf32>
    %56 = math.tanh %55 : vector<8x32xf32>
    %cst_24 = arith.constant dense<0.000000e+00> : vector<8x32xf32>
    %57 = tpu.matmul %56, %3, %cst_24 {dimension_numbers = #tpu.dot_dimension_numbers<[1], [0], [0], [1], [0, 0, 1, 1], [], []>} : vector<8x32xf32>, vector<32x32xf32>, vector<8x32xf32> -> vector<8x32xf32>
    %58 = vector.broadcast %5 : vector<1x32xf32> to vector<8x32xf32>
    %59 = arith.addf %53, %58 : vector<8x32xf32>
    %60 = arith.addf %57, %59 : vector<8x32xf32>
    %61 = math.tanh %60 : vector<8x32xf32>
    %cst_25 = arith.constant dense<0.000000e+00> : vector<8x32xf32>
    %62 = tpu.matmul %56, %1, %cst_25 {dimension_numbers = #tpu.dot_dimension_numbers<[1], [0], [0], [1], [0, 0, 1, 1], [], []>} : vector<8x32xf32>, vector<32x32xf32>, vector<8x32xf32> -> vector<8x32xf32>
    %cst_26 = arith.constant dense<0.000000e+00> : vector<8x32xf32>
    %63 = tpu.matmul %61, %4, %cst_26 {dimension_numbers = #tpu.dot_dimension_numbers<[1], [0], [0], [1], [0, 0, 1, 1], [], []>} : vector<8x32xf32>, vector<32x32xf32>, vector<8x32xf32> -> vector<8x32xf32>
    %64 = vector.extract_strided_slice %9 {offsets = [40, 0], sizes = [8, 32], strides = [1, 1]} : vector<96x32xf32> to vector<8x32xf32>
    %65 = arith.addf %64, %62 : vector<8x32xf32>
    %66 = math.tanh %65 : vector<8x32xf32>
    %cst_27 = arith.constant dense<0.000000e+00> : vector<8x32xf32>
    %67 = tpu.matmul %66, %3, %cst_27 {dimension_numbers = #tpu.dot_dimension_numbers<[1], [0], [0], [1], [0, 0, 1, 1], [], []>} : vector<8x32xf32>, vector<32x32xf32>, vector<8x32xf32> -> vector<8x32xf32>
    %68 = vector.broadcast %5 : vector<1x32xf32> to vector<8x32xf32>
    %69 = arith.addf %63, %68 : vector<8x32xf32>
    %70 = arith.addf %67, %69 : vector<8x32xf32>
    %71 = math.tanh %70 : vector<8x32xf32>
    %cst_28 = arith.constant dense<0.000000e+00> : vector<8x32xf32>
    %72 = tpu.matmul %66, %1, %cst_28 {dimension_numbers = #tpu.dot_dimension_numbers<[1], [0], [0], [1], [0, 0, 1, 1], [], []>} : vector<8x32xf32>, vector<32x32xf32>, vector<8x32xf32> -> vector<8x32xf32>
    %cst_29 = arith.constant dense<0.000000e+00> : vector<8x32xf32>
    %73 = tpu.matmul %71, %4, %cst_29 {dimension_numbers = #tpu.dot_dimension_numbers<[1], [0], [0], [1], [0, 0, 1, 1], [], []>} : vector<8x32xf32>, vector<32x32xf32>, vector<8x32xf32> -> vector<8x32xf32>
    %74 = vector.extract_strided_slice %9 {offsets = [48, 0], sizes = [8, 32], strides = [1, 1]} : vector<96x32xf32> to vector<8x32xf32>
    %75 = arith.addf %74, %72 : vector<8x32xf32>
    %76 = math.tanh %75 : vector<8x32xf32>
    %cst_30 = arith.constant dense<0.000000e+00> : vector<8x32xf32>
    %77 = tpu.matmul %76, %3, %cst_30 {dimension_numbers = #tpu.dot_dimension_numbers<[1], [0], [0], [1], [0, 0, 1, 1], [], []>} : vector<8x32xf32>, vector<32x32xf32>, vector<8x32xf32> -> vector<8x32xf32>
    %78 = vector.broadcast %5 : vector<1x32xf32> to vector<8x32xf32>
    %79 = arith.addf %73, %78 : vector<8x32xf32>
    %80 = arith.addf %77, %79 : vector<8x32xf32>
    %81 = math.tanh %80 : vector<8x32xf32>
    %cst_31 = arith.constant dense<0.000000e+00> : vector<8x32xf32>
    %82 = tpu.matmul %76, %1, %cst_31 {dimension_numbers = #tpu.dot_dimension_numbers<[1], [0], [0], [1], [0, 0, 1, 1], [], []>} : vector<8x32xf32>, vector<32x32xf32>, vector<8x32xf32> -> vector<8x32xf32>
    %cst_32 = arith.constant dense<0.000000e+00> : vector<8x32xf32>
    %83 = tpu.matmul %81, %4, %cst_32 {dimension_numbers = #tpu.dot_dimension_numbers<[1], [0], [0], [1], [0, 0, 1, 1], [], []>} : vector<8x32xf32>, vector<32x32xf32>, vector<8x32xf32> -> vector<8x32xf32>
    %84 = vector.extract_strided_slice %9 {offsets = [56, 0], sizes = [8, 32], strides = [1, 1]} : vector<96x32xf32> to vector<8x32xf32>
    %85 = arith.addf %84, %82 : vector<8x32xf32>
    %86 = math.tanh %85 : vector<8x32xf32>
    %cst_33 = arith.constant dense<0.000000e+00> : vector<8x32xf32>
    %87 = tpu.matmul %86, %3, %cst_33 {dimension_numbers = #tpu.dot_dimension_numbers<[1], [0], [0], [1], [0, 0, 1, 1], [], []>} : vector<8x32xf32>, vector<32x32xf32>, vector<8x32xf32> -> vector<8x32xf32>
    %88 = vector.broadcast %5 : vector<1x32xf32> to vector<8x32xf32>
    %89 = arith.addf %83, %88 : vector<8x32xf32>
    %90 = arith.addf %87, %89 : vector<8x32xf32>
    %91 = math.tanh %90 : vector<8x32xf32>
    %cst_34 = arith.constant dense<0.000000e+00> : vector<8x32xf32>
    %92 = tpu.matmul %86, %1, %cst_34 {dimension_numbers = #tpu.dot_dimension_numbers<[1], [0], [0], [1], [0, 0, 1, 1], [], []>} : vector<8x32xf32>, vector<32x32xf32>, vector<8x32xf32> -> vector<8x32xf32>
    %cst_35 = arith.constant dense<0.000000e+00> : vector<8x32xf32>
    %93 = tpu.matmul %91, %4, %cst_35 {dimension_numbers = #tpu.dot_dimension_numbers<[1], [0], [0], [1], [0, 0, 1, 1], [], []>} : vector<8x32xf32>, vector<32x32xf32>, vector<8x32xf32> -> vector<8x32xf32>
    %94 = vector.extract_strided_slice %9 {offsets = [64, 0], sizes = [8, 32], strides = [1, 1]} : vector<96x32xf32> to vector<8x32xf32>
    %95 = arith.addf %94, %92 : vector<8x32xf32>
    %96 = math.tanh %95 : vector<8x32xf32>
    %cst_36 = arith.constant dense<0.000000e+00> : vector<8x32xf32>
    %97 = tpu.matmul %96, %3, %cst_36 {dimension_numbers = #tpu.dot_dimension_numbers<[1], [0], [0], [1], [0, 0, 1, 1], [], []>} : vector<8x32xf32>, vector<32x32xf32>, vector<8x32xf32> -> vector<8x32xf32>
    %98 = vector.broadcast %5 : vector<1x32xf32> to vector<8x32xf32>
    %99 = arith.addf %93, %98 : vector<8x32xf32>
    %100 = arith.addf %97, %99 : vector<8x32xf32>
    %101 = math.tanh %100 : vector<8x32xf32>
    %cst_37 = arith.constant dense<0.000000e+00> : vector<8x32xf32>
    %102 = tpu.matmul %96, %1, %cst_37 {dimension_numbers = #tpu.dot_dimension_numbers<[1], [0], [0], [1], [0, 0, 1, 1], [], []>} : vector<8x32xf32>, vector<32x32xf32>, vector<8x32xf32> -> vector<8x32xf32>
    %cst_38 = arith.constant dense<0.000000e+00> : vector<8x32xf32>
    %103 = tpu.matmul %101, %4, %cst_38 {dimension_numbers = #tpu.dot_dimension_numbers<[1], [0], [0], [1], [0, 0, 1, 1], [], []>} : vector<8x32xf32>, vector<32x32xf32>, vector<8x32xf32> -> vector<8x32xf32>
    %104 = vector.extract_strided_slice %9 {offsets = [72, 0], sizes = [8, 32], strides = [1, 1]} : vector<96x32xf32> to vector<8x32xf32>
    %105 = arith.addf %104, %102 : vector<8x32xf32>
    %106 = math.tanh %105 : vector<8x32xf32>
    %cst_39 = arith.constant dense<0.000000e+00> : vector<8x32xf32>
    %107 = tpu.matmul %106, %3, %cst_39 {dimension_numbers = #tpu.dot_dimension_numbers<[1], [0], [0], [1], [0, 0, 1, 1], [], []>} : vector<8x32xf32>, vector<32x32xf32>, vector<8x32xf32> -> vector<8x32xf32>
    %108 = vector.broadcast %5 : vector<1x32xf32> to vector<8x32xf32>
    %109 = arith.addf %103, %108 : vector<8x32xf32>
    %110 = arith.addf %107, %109 : vector<8x32xf32>
    %111 = math.tanh %110 : vector<8x32xf32>
    %cst_40 = arith.constant dense<0.000000e+00> : vector<8x32xf32>
    %112 = tpu.matmul %106, %1, %cst_40 {dimension_numbers = #tpu.dot_dimension_numbers<[1], [0], [0], [1], [0, 0, 1, 1], [], []>} : vector<8x32xf32>, vector<32x32xf32>, vector<8x32xf32> -> vector<8x32xf32>
    %cst_41 = arith.constant dense<0.000000e+00> : vector<8x32xf32>
    %113 = tpu.matmul %111, %4, %cst_41 {dimension_numbers = #tpu.dot_dimension_numbers<[1], [0], [0], [1], [0, 0, 1, 1], [], []>} : vector<8x32xf32>, vector<32x32xf32>, vector<8x32xf32> -> vector<8x32xf32>
    %114 = vector.extract_strided_slice %9 {offsets = [80, 0], sizes = [8, 32], strides = [1, 1]} : vector<96x32xf32> to vector<8x32xf32>
    %115 = arith.addf %114, %112 : vector<8x32xf32>
    %116 = math.tanh %115 : vector<8x32xf32>
    %cst_42 = arith.constant dense<0.000000e+00> : vector<8x32xf32>
    %117 = tpu.matmul %116, %3, %cst_42 {dimension_numbers = #tpu.dot_dimension_numbers<[1], [0], [0], [1], [0, 0, 1, 1], [], []>} : vector<8x32xf32>, vector<32x32xf32>, vector<8x32xf32> -> vector<8x32xf32>
    %118 = vector.broadcast %5 : vector<1x32xf32> to vector<8x32xf32>
    %119 = arith.addf %113, %118 : vector<8x32xf32>
    %120 = arith.addf %117, %119 : vector<8x32xf32>
    %121 = math.tanh %120 : vector<8x32xf32>
    %cst_43 = arith.constant dense<0.000000e+00> : vector<8x32xf32>
    %122 = tpu.matmul %116, %1, %cst_43 {dimension_numbers = #tpu.dot_dimension_numbers<[1], [0], [0], [1], [0, 0, 1, 1], [], []>} : vector<8x32xf32>, vector<32x32xf32>, vector<8x32xf32> -> vector<8x32xf32>
    %cst_44 = arith.constant dense<0.000000e+00> : vector<8x32xf32>
    %123 = tpu.matmul %121, %4, %cst_44 {dimension_numbers = #tpu.dot_dimension_numbers<[1], [0], [0], [1], [0, 0, 1, 1], [], []>} : vector<8x32xf32>, vector<32x32xf32>, vector<8x32xf32> -> vector<8x32xf32>
    %124 = vector.extract_strided_slice %9 {offsets = [88, 0], sizes = [8, 32], strides = [1, 1]} : vector<96x32xf32> to vector<8x32xf32>
    %125 = arith.addf %124, %122 : vector<8x32xf32>
    %126 = math.tanh %125 : vector<8x32xf32>
    %cst_45 = arith.constant dense<0.000000e+00> : vector<8x32xf32>
    %127 = tpu.matmul %126, %3, %cst_45 {dimension_numbers = #tpu.dot_dimension_numbers<[1], [0], [0], [1], [0, 0, 1, 1], [], []>} : vector<8x32xf32>, vector<32x32xf32>, vector<8x32xf32> -> vector<8x32xf32>
    %128 = vector.broadcast %5 : vector<1x32xf32> to vector<8x32xf32>
    %129 = arith.addf %123, %128 : vector<8x32xf32>
    %130 = arith.addf %127, %129 : vector<8x32xf32>
    %131 = math.tanh %130 : vector<8x32xf32>
    %c152 = arith.constant 152 : index
    %c0_46 = arith.constant 0 : index
    %132 = vector.load %arg1[%c152, %c0_46] : memref<192x32xf32, #tpu.memory_space<vmem>>, vector<32x1xf32>
    %c184 = arith.constant 184 : index
    %c0_47 = arith.constant 0 : index
    %133 = vector.load %arg1[%c184, %c0_47] : memref<192x32xf32, #tpu.memory_space<vmem>>, vector<1x1xf32>
    %cst_48 = arith.constant dense<0.000000e+00> : vector<8x1xf32>
    %134 = tpu.matmul %131, %132, %cst_48 {dimension_numbers = #tpu.dot_dimension_numbers<[1], [0], [0], [1], [0, 0, 1, 1], [], []>} : vector<8x32xf32>, vector<32x1xf32>, vector<8x1xf32> -> vector<8x1xf32>
    %135 = vector.broadcast %133 : vector<1x1xf32> to vector<8x1xf32>
    %136 = arith.addf %134, %135 : vector<8x1xf32>
    %c0_49 = arith.constant 0 : index
    %c0_50 = arith.constant 0 : index
    %137 = vector.load %arg2[%c0_49, %c0_50] : memref<8x1xf32, #tpu.memory_space<vmem>>, vector<8x1xf32>
    tpu.vector_store %arg2[%c0_49, %c0_50], %136 {strides = array<i32>} : memref<8x1xf32, #tpu.memory_space<vmem>>, vector<8x1xf32>,
    return
  }
}

</mosaic_0001>

<llo_original>
// kernel: tpu_custom_call.1
$region0: #{tpu_custom_call.1}
  #allocation0 [shape = 'u32[]', space=smem, size = 0x4, offset = 0x4, fixed_abs, tag = 'smem constant byte address 0x4 - core index']
  #allocation1 [shape = 'u32[72,128]{1,0:T(1,128)}', space=vmem, size = 0x9000, scoped, tag = 'internal scratch']
  %s0 = inlined_call_operand.vmem [shape: f32[96,24], index: 0, kind: input, shape index: {}]
  %s1 = inlined_call_operand.vmem [shape: f32[192,32], index: 1, kind: input, shape index: {}]
  %s2 = inlined_call_operand.vmem [shape: f32[8,1], index: 2, kind: output, shape index: {}]
  %s3 = sld [smem:[#allocation0]]
  $region18: #{tpu_custom_call.1} parent=0
    _
  %s5 = ssub.s32 1, %s3
  %s6 = scalar_select 0, %s5, %s3
  // Predicated region
  $region2: #{tpu_custom_call.1} parent=0 // pred_check
    _
  $region3: #{tpu_custom_call.1} parent=0 // pred_check_branch
    %8 = sbr.rel (0) target = $region5
  $region4: #{tpu_custom_call.1} parent=0 // pred_region
    _
  $region5: #{tpu_custom_call.1} parent=0 // pred_fallthru
    _
  // Predicated region
  $region6: #{tpu_custom_call.1} parent=0 // pred_check
    _
  $region7: #{tpu_custom_call.1} parent=0 // pred_check_branch
    %10 = sbr.rel (0) target = $region9
  $region8: #{tpu_custom_call.1} parent=0 // pred_region
    _
  $region9: #{tpu_custom_call.1} parent=0 // pred_fallthru
    _
  %v11 = vld [vmem:[%s1 + $0x10] sm:$0xff]
  %v12 = vld [vmem:[%s1 + $0x18] sm:$0xff]
  %v13 = vld [vmem:[%s1 + $0x20] sm:$0xff]
  %v14 = vld [vmem:[%s1 + $0x28] sm:$0xff]
  %v15 = vld [vmem:[%s1 + $0x30] sm:$0xff]
  %v16 = vld [vmem:[%s1 + $0x38] sm:$0xff]
  %v17 = vld [vmem:[%s1 + $0x40] sm:$0xff]
  %v18 = vld [vmem:[%s1 + $0x48] sm:$0x1]
  %v19 = vld [vmem:[%s1 + $0x50] sm:$0xff]
  %v20 = vld [vmem:[%s1 + $0x58] sm:$0xff]
  %v21 = vld [vmem:[%s1 + $0x60] sm:$0xff]
  %v22 = vld [vmem:[%s1 + $0x68] sm:$0xff]
  %v23 = vld [vmem:[%s1 + $0x70] sm:$0xff]
  %v24 = vld [vmem:[%s1 + $0x78] sm:$0xff]
  %v25 = vld [vmem:[%s1 + $0x80] sm:$0xff]
  %v26 = vld [vmem:[%s1 + $0x88] sm:$0xff]
  %v27 = vld [vmem:[%s1 + $0x90] sm:$0x1]
  %v28 = vld [vmem:[%s0] sm:$0xff]
  %v29 = vld [vmem:[%s0 + $0x8] sm:$0xff]
  %v30 = vld [vmem:[%s0 + $0x10] sm:$0xff]
  %v31 = vld [vmem:[%s0 + $0x18] sm:$0xff]
  %v32 = vld [vmem:[%s0 + $0x20] sm:$0xff]
  %v33 = vld [vmem:[%s0 + $0x28] sm:$0xff]
  %v34 = vld [vmem:[%s0 + $0x30] sm:$0xff]
  %v35 = vld [vmem:[%s0 + $0x38] sm:$0xff]
  %v36 = vld [vmem:[%s0 + $0x40] sm:$0xff]
  %v37 = vld [vmem:[%s0 + $0x48] sm:$0xff]
  %v38 = vld [vmem:[%s0 + $0x50] sm:$0xff]
  %v39 = vld [vmem:[%s0 + $0x58] sm:$0xff]
  %v40 = vperm.slane %v18, 0
  %vm41 = vcmask 195584
  %v43 = vsel %vm41, %v28, 0
  %v46 = vsel %vm41, %v29, 0
  %v49 = vsel %vm41, %v30, 0
  %v52 = vsel %vm41, %v31, 0
  %v55 = vsel %vm41, %v32, 0
  %v58 = vsel %vm41, %v33, 0
  %v61 = vsel %vm41, %v34, 0
  %v64 = vsel %vm41, %v35, 0
  %v67 = vsel %vm41, %v36, 0
  %v70 = vsel %vm41, %v37, 0
  %v73 = vsel %vm41, %v38, 0
  %v76 = vsel %vm41, %v39, 0
  %78 = vmatpush.msra.mxu0 0.0
  %79 = vmatpush.msra.mxu0 0.0
  %80 = vmatpush.msra.mxu0 0.0
  %81 = vmatpush.msra.mxu0 0.0
  %82 = vmatpush.msra.mxu0 0.0
  %83 = vmatpush.msra.mxu0 0.0
  %84 = vmatpush.msra.mxu0 0.0
  %85 = vmatpush.msra.mxu0 0.0
  %86 = vmatpush.msra.mxu0 0.0
  %87 = vmatpush.msra.mxu0 0.0
  %88 = vmatpush.msra.mxu0 0.0
  %89 = vmatpush.msra.mxu0 0.0
  %90 = vmatpush.msra.mxu0 0.0
  %91 = vmatpush.msra.mxu0 %v13
  %92 = vmatpush.msra.mxu0 %v12
  %93 = vmatpush.msra.mxu0 %v11
  %94 = vmatmul.f32.gmra.mxu0 %v43
  %v95 = vpop.f32.mrf.mxu0
  %v96 = vadd.f32 %v40, %v95
  %97 = vmatmul.f32.gmra.mxu0 %v46
  %v98 = vpop.f32.mrf.mxu0
  %v99 = vadd.f32 %v40, %v98
  %100 = vmatmul.f32.gmra.mxu0 %v49
  %v101 = vpop.f32.mrf.mxu0
  %v102 = vadd.f32 %v40, %v101
  %103 = vmatmul.f32.gmra.mxu0 %v52
  %v104 = vpop.f32.mrf.mxu0
  %v105 = vadd.f32 %v40, %v104
  %106 = vmatmul.f32.gmra.mxu0 %v55
  %v107 = vpop.f32.mrf.mxu0
  %v108 = vadd.f32 %v40, %v107
  %109 = vmatmul.f32.gmra.mxu0 %v58
  %v110 = vpop.f32.mrf.mxu0
  %v111 = vadd.f32 %v40, %v110
  %112 = vmatmul.f32.gmra.mxu0 %v61
  %v113 = vpop.f32.mrf.mxu0
  %v114 = vadd.f32 %v40, %v113
  %115 = vmatmul.f32.gmra.mxu0 %v64
  %v116 = vpop.f32.mrf.mxu0
  %v117 = vadd.f32 %v40, %v116
  %118 = vmatmul.f32.gmra.mxu0 %v67
  %v119 = vpop.f32.mrf.mxu0
  %v120 = vadd.f32 %v40, %v119
  %121 = vmatmul.f32.gmra.mxu0 %v70
  %v122 = vpop.f32.mrf.mxu0
  %v123 = vadd.f32 %v40, %v122
  %124 = vmatmul.f32.gmra.mxu0 %v73
  %v125 = vpop.f32.mrf.mxu0
  %v126 = vadd.f32 %v40, %v125
  %127 = vmatmul.f32.gmra.mxu0 %v76
  %v128 = vpop.f32.mrf.mxu0
  %v129 = vadd.f32 %v40, %v128
  %130 = vdwg.mxu0
  %v131 = vld [vmem:[%s1] sm:$0xff]
  %v132 = vld [vmem:[%s1 + $0x8] sm:$0xff]
  %vm133 = vcmask 261120
  %v135 = vsel %vm133, %v131, 0
  %137 = vmatpush.msra.mxu0 0.0
  %138 = vmatpush.msra.mxu0 0.0
  %139 = vmatpush.msra.mxu0 0.0
  %140 = vmatpush.msra.mxu0 0.0
  %141 = vmatpush.msra.mxu0 0.0
  %142 = vmatpush.msra.mxu0 0.0
  %143 = vmatpush.msra.mxu0 0.0
  %144 = vmatpush.msra.mxu0 0.0
  %145 = vmatpush.msra.mxu0 0.0
  %146 = vmatpush.msra.mxu0 0.0
  %147 = vmatpush.msra.mxu0 0.0
  %148 = vmatpush.msra.mxu0 0.0
  %149 = vmatpush.msra.mxu0 %v17
  %150 = vmatpush.msra.mxu0 %v16
  %151 = vmatpush.msra.mxu0 %v15
  %152 = vmatpush.msra.mxu0 %v14
  %153 = vmatmul.f32.gmra.mxu0 %v135
  %v154 = vpop.f32.mrf.mxu0
  %v155 = vadd.f32 0.0, %v154
  %156 = vdwg.mxu0
  %v157 = vadd.f32 %v96, %v155
  %v158 = vtanh.pop %v157
  %v159 = vperm.slane %v27, 0
  %v161 = vsel %vm133, %v132, 0
  %163 = vmatpush.msra.mxu0 0.0
  %164 = vmatpush.msra.mxu0 0.0
  %165 = vmatpush.msra.mxu0 0.0
  %166 = vmatpush.msra.mxu0 0.0
  %167 = vmatpush.msra.mxu0 0.0
  %168 = vmatpush.msra.mxu0 0.0
  %169 = vmatpush.msra.mxu0 0.0
  %170 = vmatpush.msra.mxu0 0.0
  %171 = vmatpush.msra.mxu0 0.0
  %172 = vmatpush.msra.mxu0 0.0
  %173 = vmatpush.msra.mxu0 0.0
  %174 = vmatpush.msra.mxu0 0.0
  %175 = vmatpush.msra.mxu0 %v26
  %176 = vmatpush.msra.mxu0 %v25
  %177 = vmatpush.msra.mxu0 %v24
  %178 = vmatpush.msra.mxu0 %v23
  %179 = vmatmul.f32.gmra.mxu0 %v161
  %v180 = vpop.f32.mrf.mxu0
  %v181 = vadd.f32 %v159, %v180
  %182 = vdwg.mxu0
  %v184 = vsel %vm133, %v158, 0
  %186 = vmatpush.msra.mxu0 0.0
  %187 = vmatpush.msra.mxu0 0.0
  %188 = vmatpush.msra.mxu0 0.0
  %189 = vmatpush.msra.mxu0 0.0
  %190 = vmatpush.msra.mxu0 0.0
  %191 = vmatpush.msra.mxu0 0.0
  %192 = vmatpush.msra.mxu0 0.0
  %193 = vmatpush.msra.mxu0 0.0
  %194 = vmatpush.msra.mxu0 0.0
  %195 = vmatpush.msra.mxu0 0.0
  %196 = vmatpush.msra.mxu0 0.0
  %197 = vmatpush.msra.mxu0 0.0
  %198 = vmatpush.msra.mxu0 %v22
  %199 = vmatpush.msra.mxu0 %v21
  %200 = vmatpush.msra.mxu0 %v20
  %201 = vmatpush.msra.mxu0 %v19
  %202 = vmatmul.f32.gmra.mxu0 %v184
  %v203 = vpop.f32.mrf.mxu0
  %v204 = vadd.f32 %v181, %v203
  %205 = vdwg.mxu0
  %v206 = vtanh.pop %v204
  %207 = vmatpush.msra.mxu0 0.0
  %208 = vmatpush.msra.mxu0 0.0
  %209 = vmatpush.msra.mxu0 0.0
  %210 = vmatpush.msra.mxu0 0.0
  %211 = vmatpush.msra.mxu0 0.0
  %212 = vmatpush.msra.mxu0 0.0
  %213 = vmatpush.msra.mxu0 0.0
  %214 = vmatpush.msra.mxu0 0.0
  %215 = vmatpush.msra.mxu0 0.0
  %216 = vmatpush.msra.mxu0 0.0
  %217 = vmatpush.msra.mxu0 0.0
  %218 = vmatpush.msra.mxu0 0.0
  %219 = vmatpush.msra.mxu0 %v17
  %220 = vmatpush.msra.mxu0 %v16
  %221 = vmatpush.msra.mxu0 %v15
  %222 = vmatpush.msra.mxu0 %v14
  %223 = vmatmul.f32.gmra.mxu0 %v184
  %v224 = vpop.f32.mrf.mxu0
  %v225 = vadd.f32 0.0, %v224
  %226 = vdwg.mxu0
  %v227 = vadd.f32 %v99, %v225
  %v228 = vtanh.pop %v227
  %v230 = vsel %vm133, %v206, 0
  %232 = vmatpush.msra.mxu0 0.0
  %233 = vmatpush.msra.mxu0 0.0
  %234 = vmatpush.msra.mxu0 0.0
  %235 = vmatpush.msra.mxu0 0.0
  %236 = vmatpush.msra.mxu0 0.0
  %237 = vmatpush.msra.mxu0 0.0
  %238 = vmatpush.msra.mxu0 0.0
  %239 = vmatpush.msra.mxu0 0.0
  %240 = vmatpush.msra.mxu0 0.0
  %241 = vmatpush.msra.mxu0 0.0
  %242 = vmatpush.msra.mxu0 0.0
  %243 = vmatpush.msra.mxu0 0.0
  %244 = vmatpush.msra.mxu0 %v26
  %245 = vmatpush.msra.mxu0 %v25
  %246 = vmatpush.msra.mxu0 %v24
  %247 = vmatpush.msra.mxu0 %v23
  %248 = vmatmul.f32.gmra.mxu0 %v230
  %v249 = vpop.f32.mrf.mxu0
  %v250 = vadd.f32 %v159, %v249
  %251 = vdwg.mxu0
  %v253 = vsel %vm133, %v228, 0
  %255 = vmatpush.msra.mxu0 0.0
  %256 = vmatpush.msra.mxu0 0.0
  %257 = vmatpush.msra.mxu0 0.0
  %258 = vmatpush.msra.mxu0 0.0
  %259 = vmatpush.msra.mxu0 0.0
  %260 = vmatpush.msra.mxu0 0.0
  %261 = vmatpush.msra.mxu0 0.0
  %262 = vmatpush.msra.mxu0 0.0
  %263 = vmatpush.msra.mxu0 0.0
  %264 = vmatpush.msra.mxu0 0.0
  %265 = vmatpush.msra.mxu0 0.0
  %266 = vmatpush.msra.mxu0 0.0
  %267 = vmatpush.msra.mxu0 %v22
  %268 = vmatpush.msra.mxu0 %v21
  %269 = vmatpush.msra.mxu0 %v20
  %270 = vmatpush.msra.mxu0 %v19
  %271 = vmatmul.f32.gmra.mxu0 %v253
  %v272 = vpop.f32.mrf.mxu0
  %v273 = vadd.f32 %v250, %v272
  %274 = vdwg.mxu0
  %v275 = vtanh.pop %v273
  %276 = vmatpush.msra.mxu0 0.0
  %277 = vmatpush.msra.mxu0 0.0
  %278 = vmatpush.msra.mxu0 0.0
  %279 = vmatpush.msra.mxu0 0.0
  %280 = vmatpush.msra.mxu0 0.0
  %281 = vmatpush.msra.mxu0 0.0
  %282 = vmatpush.msra.mxu0 0.0
  %283 = vmatpush.msra.mxu0 0.0
  %284 = vmatpush.msra.mxu0 0.0
  %285 = vmatpush.msra.mxu0 0.0
  %286 = vmatpush.msra.mxu0 0.0
  %287 = vmatpush.msra.mxu0 0.0
  %288 = vmatpush.msra.mxu0 %v17
  %289 = vmatpush.msra.mxu0 %v16
  %290 = vmatpush.msra.mxu0 %v15
  %291 = vmatpush.msra.mxu0 %v14
  %292 = vmatmul.f32.gmra.mxu0 %v253
  %v293 = vpop.f32.mrf.mxu0
  %v294 = vadd.f32 0.0, %v293
  %295 = vdwg.mxu0
  %v296 = vadd.f32 %v102, %v294
  %v297 = vtanh.pop %v296
  %v299 = vsel %vm133, %v275, 0
  %301 = vmatpush.msra.mxu0 0.0
  %302 = vmatpush.msra.mxu0 0.0
  %303 = vmatpush.msra.mxu0 0.0
  %304 = vmatpush.msra.mxu0 0.0
  %305 = vmatpush.msra.mxu0 0.0
  %306 = vmatpush.msra.mxu0 0.0
  %307 = vmatpush.msra.mxu0 0.0
  %308 = vmatpush.msra.mxu0 0.0
  %309 = vmatpush.msra.mxu0 0.0
  %310 = vmatpush.msra.mxu0 0.0
  %311 = vmatpush.msra.mxu0 0.0
  %312 = vmatpush.msra.mxu0 0.0
  %313 = vmatpush.msra.mxu0 %v26
  %314 = vmatpush.msra.mxu0 %v25
  %315 = vmatpush.msra.mxu0 %v24
  %316 = vmatpush.msra.mxu0 %v23
  %317 = vmatmul.f32.gmra.mxu0 %v299
  %v318 = vpop.f32.mrf.mxu0
  %v319 = vadd.f32 %v159, %v318
  %320 = vdwg.mxu0
  %v322 = vsel %vm133, %v297, 0
  %324 = vmatpush.msra.mxu0 0.0
  %325 = vmatpush.msra.mxu0 0.0
  %326 = vmatpush.msra.mxu0 0.0
  %327 = vmatpush.msra.mxu0 0.0
  %328 = vmatpush.msra.mxu0 0.0
  %329 = vmatpush.msra.mxu0 0.0
  %330 = vmatpush.msra.mxu0 0.0
  %331 = vmatpush.msra.mxu0 0.0
  %332 = vmatpush.msra.mxu0 0.0
  %333 = vmatpush.msra.mxu0 0.0
  %334 = vmatpush.msra.mxu0 0.0
  %335 = vmatpush.msra.mxu0 0.0
  %336 = vmatpush.msra.mxu0 %v22
  %337 = vmatpush.msra.mxu0 %v21
  %338 = vmatpush.msra.mxu0 %v20
  %339 = vmatpush.msra.mxu0 %v19
  %340 = vmatmul.f32.gmra.mxu0 %v322
  %v341 = vpop.f32.mrf.mxu0
  %v342 = vadd.f32 %v319, %v341
  %343 = vdwg.mxu0
  %v344 = vtanh.pop %v342
  %345 = vmatpush.msra.mxu0 0.0
  %346 = vmatpush.msra.mxu0 0.0
  %347 = vmatpush.msra.mxu0 0.0
  %348 = vmatpush.msra.mxu0 0.0
  %349 = vmatpush.msra.mxu0 0.0
  %350 = vmatpush.msra.mxu0 0.0
  %351 = vmatpush.msra.mxu0 0.0
  %352 = vmatpush.msra.mxu0 0.0
  %353 = vmatpush.msra.mxu0 0.0
  %354 = vmatpush.msra.mxu0 0.0
  %355 = vmatpush.msra.mxu0 0.0
  %356 = vmatpush.msra.mxu0 0.0
  %357 = vmatpush.msra.mxu0 %v17
  %358 = vmatpush.msra.mxu0 %v16
  %359 = vmatpush.msra.mxu0 %v15
  %360 = vmatpush.msra.mxu0 %v14
  %361 = vmatmul.f32.gmra.mxu0 %v322
  %v362 = vpop.f32.mrf.mxu0
  %v363 = vadd.f32 0.0, %v362
  %364 = vdwg.mxu0
  %v365 = vadd.f32 %v105, %v363
  %v366 = vtanh.pop %v365
  %v368 = vsel %vm133, %v344, 0
  %370 = vmatpush.msra.mxu0 0.0
  %371 = vmatpush.msra.mxu0 0.0
  %372 = vmatpush.msra.mxu0 0.0
  %373 = vmatpush.msra.mxu0 0.0
  %374 = vmatpush.msra.mxu0 0.0
  %375 = vmatpush.msra.mxu0 0.0
  %376 = vmatpush.msra.mxu0 0.0
  %377 = vmatpush.msra.mxu0 0.0
  %378 = vmatpush.msra.mxu0 0.0
  %379 = vmatpush.msra.mxu0 0.0
  %380 = vmatpush.msra.mxu0 0.0
  %381 = vmatpush.msra.mxu0 0.0
  %382 = vmatpush.msra.mxu0 %v26
  %383 = vmatpush.msra.mxu0 %v25
  %384 = vmatpush.msra.mxu0 %v24
  %385 = vmatpush.msra.mxu0 %v23
  %386 = vmatmul.f32.gmra.mxu0 %v368
  %v387 = vpop.f32.mrf.mxu0
  %v388 = vadd.f32 %v159, %v387
  %389 = vdwg.mxu0
  %v391 = vsel %vm133, %v366, 0
  %393 = vmatpush.msra.mxu0 0.0
  %394 = vmatpush.msra.mxu0 0.0
  %395 = vmatpush.msra.mxu0 0.0
  %396 = vmatpush.msra.mxu0 0.0
  %397 = vmatpush.msra.mxu0 0.0
  %398 = vmatpush.msra.mxu0 0.0
  %399 = vmatpush.msra.mxu0 0.0
  %400 = vmatpush.msra.mxu0 0.0
  %401 = vmatpush.msra.mxu0 0.0
  %402 = vmatpush.msra.mxu0 0.0
  %403 = vmatpush.msra.mxu0 0.0
  %404 = vmatpush.msra.mxu0 0.0
  %405 = vmatpush.msra.mxu0 %v22
  %406 = vmatpush.msra.mxu0 %v21
  %407 = vmatpush.msra.mxu0 %v20
  %408 = vmatpush.msra.mxu0 %v19
  %409 = vmatmul.f32.gmra.mxu0 %v391
  %v410 = vpop.f32.mrf.mxu0
  %v411 = vadd.f32 %v388, %v410
  %412 = vdwg.mxu0
  %v413 = vtanh.pop %v411
  %414 = vmatpush.msra.mxu0 0.0
  %415 = vmatpush.msra.mxu0 0.0
  %416 = vmatpush.msra.mxu0 0.0
  %417 = vmatpush.msra.mxu0 0.0
  %418 = vmatpush.msra.mxu0 0.0
  %419 = vmatpush.msra.mxu0 0.0
  %420 = vmatpush.msra.mxu0 0.0
  %421 = vmatpush.msra.mxu0 0.0
  %422 = vmatpush.msra.mxu0 0.0
  %423 = vmatpush.msra.mxu0 0.0
  %424 = vmatpush.msra.mxu0 0.0
  %425 = vmatpush.msra.mxu0 0.0
  %426 = vmatpush.msra.mxu0 %v17
  %427 = vmatpush.msra.mxu0 %v16
  %428 = vmatpush.msra.mxu0 %v15
  %429 = vmatpush.msra.mxu0 %v14
  %430 = vmatmul.f32.gmra.mxu0 %v391
  %v431 = vpop.f32.mrf.mxu0
  %v432 = vadd.f32 0.0, %v431
  %433 = vdwg.mxu0
  %v434 = vadd.f32 %v108, %v432
  %v435 = vtanh.pop %v434
  %v437 = vsel %vm133, %v413, 0
  %439 = vmatpush.msra.mxu0 0.0
  %440 = vmatpush.msra.mxu0 0.0
  %441 = vmatpush.msra.mxu0 0.0
  %442 = vmatpush.msra.mxu0 0.0
  %443 = vmatpush.msra.mxu0 0.0
  %444 = vmatpush.msra.mxu0 0.0
  %445 = vmatpush.msra.mxu0 0.0
  %446 = vmatpush.msra.mxu0 0.0
  %447 = vmatpush.msra.mxu0 0.0
  %448 = vmatpush.msra.mxu0 0.0
  %449 = vmatpush.msra.mxu0 0.0
  %450 = vmatpush.msra.mxu0 0.0
  %451 = vmatpush.msra.mxu0 %v26
  %452 = vmatpush.msra.mxu0 %v25
  %453 = vmatpush.msra.mxu0 %v24
  %454 = vmatpush.msra.mxu0 %v23
  %455 = vmatmul.f32.gmra.mxu0 %v437
  %v456 = vpop.f32.mrf.mxu0
  %v457 = vadd.f32 %v159, %v456
  %458 = vdwg.mxu0
  %v460 = vsel %vm133, %v435, 0
  %462 = vmatpush.msra.mxu0 0.0
  %463 = vmatpush.msra.mxu0 0.0
  %464 = vmatpush.msra.mxu0 0.0
  %465 = vmatpush.msra.mxu0 0.0
  %466 = vmatpush.msra.mxu0 0.0
  %467 = vmatpush.msra.mxu0 0.0
  %468 = vmatpush.msra.mxu0 0.0
  %469 = vmatpush.msra.mxu0 0.0
  %470 = vmatpush.msra.mxu0 0.0
  %471 = vmatpush.msra.mxu0 0.0
  %472 = vmatpush.msra.mxu0 0.0
  %473 = vmatpush.msra.mxu0 0.0
  %474 = vmatpush.msra.mxu0 %v22
  %475 = vmatpush.msra.mxu0 %v21
  %476 = vmatpush.msra.mxu0 %v20
  %477 = vmatpush.msra.mxu0 %v19
  %478 = vmatmul.f32.gmra.mxu0 %v460
  %v479 = vpop.f32.mrf.mxu0
  %v480 = vadd.f32 %v457, %v479
  %481 = vdwg.mxu0
  %v482 = vtanh.pop %v480
  %483 = vmatpush.msra.mxu0 0.0
  %484 = vmatpush.msra.mxu0 0.0
  %485 = vmatpush.msra.mxu0 0.0
  %486 = vmatpush.msra.mxu0 0.0
  %487 = vmatpush.msra.mxu0 0.0
  %488 = vmatpush.msra.mxu0 0.0
  %489 = vmatpush.msra.mxu0 0.0
  %490 = vmatpush.msra.mxu0 0.0
  %491 = vmatpush.msra.mxu0 0.0
  %492 = vmatpush.msra.mxu0 0.0
  %493 = vmatpush.msra.mxu0 0.0
  %494 = vmatpush.msra.mxu0 0.0
  %495 = vmatpush.msra.mxu0 %v17
  %496 = vmatpush.msra.mxu0 %v16
  %497 = vmatpush.msra.mxu0 %v15
  %498 = vmatpush.msra.mxu0 %v14
  %499 = vmatmul.f32.gmra.mxu0 %v460
  %v500 = vpop.f32.mrf.mxu0
  %v501 = vadd.f32 0.0, %v500
  %502 = vdwg.mxu0
  %v503 = vadd.f32 %v111, %v501
  %v504 = vtanh.pop %v503
  %v506 = vsel %vm133, %v482, 0
  %508 = vmatpush.msra.mxu0 0.0
  %509 = vmatpush.msra.mxu0 0.0
  %510 = vmatpush.msra.mxu0 0.0
  %511 = vmatpush.msra.mxu0 0.0
  %512 = vmatpush.msra.mxu0 0.0
  %513 = vmatpush.msra.mxu0 0.0
  %514 = vmatpush.msra.mxu0 0.0
  %515 = vmatpush.msra.mxu0 0.0
  %516 = vmatpush.msra.mxu0 0.0
  %517 = vmatpush.msra.mxu0 0.0
  %518 = vmatpush.msra.mxu0 0.0
  %519 = vmatpush.msra.mxu0 0.0
  %520 = vmatpush.msra.mxu0 %v26
  %521 = vmatpush.msra.mxu0 %v25
  %522 = vmatpush.msra.mxu0 %v24
  %523 = vmatpush.msra.mxu0 %v23
  %524 = vmatmul.f32.gmra.mxu0 %v506
  %v525 = vpop.f32.mrf.mxu0
  %v526 = vadd.f32 %v159, %v525
  %527 = vdwg.mxu0
  %v529 = vsel %vm133, %v504, 0
  %531 = vmatpush.msra.mxu0 0.0
  %532 = vmatpush.msra.mxu0 0.0
  %533 = vmatpush.msra.mxu0 0.0
  %534 = vmatpush.msra.mxu0 0.0
  %535 = vmatpush.msra.mxu0 0.0
  %536 = vmatpush.msra.mxu0 0.0
  %537 = vmatpush.msra.mxu0 0.0
  %538 = vmatpush.msra.mxu0 0.0
  %539 = vmatpush.msra.mxu0 0.0
  %540 = vmatpush.msra.mxu0 0.0
  %541 = vmatpush.msra.mxu0 0.0
  %542 = vmatpush.msra.mxu0 0.0
  %543 = vmatpush.msra.mxu0 %v22
  %544 = vmatpush.msra.mxu0 %v21
  %545 = vmatpush.msra.mxu0 %v20
  %546 = vmatpush.msra.mxu0 %v19
  %547 = vmatmul.f32.gmra.mxu0 %v529
  %v548 = vpop.f32.mrf.mxu0
  %v549 = vadd.f32 %v526, %v548
  %550 = vdwg.mxu0
  %v551 = vtanh.pop %v549
  %552 = vmatpush.msra.mxu0 0.0
  %553 = vmatpush.msra.mxu0 0.0
  %554 = vmatpush.msra.mxu0 0.0
  %555 = vmatpush.msra.mxu0 0.0
  %556 = vmatpush.msra.mxu0 0.0
  %557 = vmatpush.msra.mxu0 0.0
  %558 = vmatpush.msra.mxu0 0.0
  %559 = vmatpush.msra.mxu0 0.0
  %560 = vmatpush.msra.mxu0 0.0
  %561 = vmatpush.msra.mxu0 0.0
  %562 = vmatpush.msra.mxu0 0.0
  %563 = vmatpush.msra.mxu0 0.0
  %564 = vmatpush.msra.mxu0 %v17
  %565 = vmatpush.msra.mxu0 %v16
  %566 = vmatpush.msra.mxu0 %v15
  %567 = vmatpush.msra.mxu0 %v14
  %568 = vmatmul.f32.gmra.mxu0 %v529
  %v569 = vpop.f32.mrf.mxu0
  %v570 = vadd.f32 0.0, %v569
  %571 = vdwg.mxu0
  %v572 = vadd.f32 %v114, %v570
  %v573 = vtanh.pop %v572
  %v575 = vsel %vm133, %v551, 0
  %577 = vmatpush.msra.mxu0 0.0
  %578 = vmatpush.msra.mxu0 0.0
  %579 = vmatpush.msra.mxu0 0.0
  %580 = vmatpush.msra.mxu0 0.0
  %581 = vmatpush.msra.mxu0 0.0
  %582 = vmatpush.msra.mxu0 0.0
  %583 = vmatpush.msra.mxu0 0.0
  %584 = vmatpush.msra.mxu0 0.0
  %585 = vmatpush.msra.mxu0 0.0
  %586 = vmatpush.msra.mxu0 0.0
  %587 = vmatpush.msra.mxu0 0.0
  %588 = vmatpush.msra.mxu0 0.0
  %589 = vmatpush.msra.mxu0 %v26
  %590 = vmatpush.msra.mxu0 %v25
  %591 = vmatpush.msra.mxu0 %v24
  %592 = vmatpush.msra.mxu0 %v23
  %593 = vmatmul.f32.gmra.mxu0 %v575
  %v594 = vpop.f32.mrf.mxu0
  %v595 = vadd.f32 %v159, %v594
  %596 = vdwg.mxu0
  %v598 = vsel %vm133, %v573, 0
  %600 = vmatpush.msra.mxu0 0.0
  %601 = vmatpush.msra.mxu0 0.0
  %602 = vmatpush.msra.mxu0 0.0
  %603 = vmatpush.msra.mxu0 0.0
  %604 = vmatpush.msra.mxu0 0.0
  %605 = vmatpush.msra.mxu0 0.0
  %606 = vmatpush.msra.mxu0 0.0
  %607 = vmatpush.msra.mxu0 0.0
  %608 = vmatpush.msra.mxu0 0.0
  %609 = vmatpush.msra.mxu0 0.0
  %610 = vmatpush.msra.mxu0 0.0
  %611 = vmatpush.msra.mxu0 0.0
  %612 = vmatpush.msra.mxu0 %v22
  %613 = vmatpush.msra.mxu0 %v21
  %614 = vmatpush.msra.mxu0 %v20
  %615 = vmatpush.msra.mxu0 %v19
  %616 = vmatmul.f32.gmra.mxu0 %v598
  %v617 = vpop.f32.mrf.mxu0
  %v618 = vadd.f32 %v595, %v617
  %619 = vdwg.mxu0
  %v620 = vtanh.pop %v618
  %621 = vmatpush.msra.mxu0 0.0
  %622 = vmatpush.msra.mxu0 0.0
  %623 = vmatpush.msra.mxu0 0.0
  %624 = vmatpush.msra.mxu0 0.0
  %625 = vmatpush.msra.mxu0 0.0
  %626 = vmatpush.msra.mxu0 0.0
  %627 = vmatpush.msra.mxu0 0.0
  %628 = vmatpush.msra.mxu0 0.0
  %629 = vmatpush.msra.mxu0 0.0
  %630 = vmatpush.msra.mxu0 0.0
  %631 = vmatpush.msra.mxu0 0.0
  %632 = vmatpush.msra.mxu0 0.0
  %633 = vmatpush.msra.mxu0 %v17
  %634 = vmatpush.msra.mxu0 %v16
  %635 = vmatpush.msra.mxu0 %v15
  %636 = vmatpush.msra.mxu0 %v14
  %637 = vmatmul.f32.gmra.mxu0 %v598
  %v638 = vpop.f32.mrf.mxu0
  %v639 = vadd.f32 0.0, %v638
  %640 = vdwg.mxu0
  %v641 = vadd.f32 %v117, %v639
  %v642 = vtanh.pop %v641
  %v644 = vsel %vm133, %v620, 0
  %646 = vmatpush.msra.mxu0 0.0
  %647 = vmatpush.msra.mxu0 0.0
  %648 = vmatpush.msra.mxu0 0.0
  %649 = vmatpush.msra.mxu0 0.0
  %650 = vmatpush.msra.mxu0 0.0
  %651 = vmatpush.msra.mxu0 0.0
  %652 = vmatpush.msra.mxu0 0.0
  %653 = vmatpush.msra.mxu0 0.0
  %654 = vmatpush.msra.mxu0 0.0
  %655 = vmatpush.msra.mxu0 0.0
  %656 = vmatpush.msra.mxu0 0.0
  %657 = vmatpush.msra.mxu0 0.0
  %658 = vmatpush.msra.mxu0 %v26
  %659 = vmatpush.msra.mxu0 %v25
  %660 = vmatpush.msra.mxu0 %v24
  %661 = vmatpush.msra.mxu0 %v23
  %662 = vmatmul.f32.gmra.mxu0 %v644
  %v663 = vpop.f32.mrf.mxu0
  %v664 = vadd.f32 %v159, %v663
  %665 = vdwg.mxu0
  %v667 = vsel %vm133, %v642, 0
  %669 = vmatpush.msra.mxu0 0.0
  %670 = vmatpush.msra.mxu0 0.0
  %671 = vmatpush.msra.mxu0 0.0
  %672 = vmatpush.msra.mxu0 0.0
  %673 = vmatpush.msra.mxu0 0.0
  %674 = vmatpush.msra.mxu0 0.0
  %675 = vmatpush.msra.mxu0 0.0
  %676 = vmatpush.msra.mxu0 0.0
  %677 = vmatpush.msra.mxu0 0.0
  %678 = vmatpush.msra.mxu0 0.0
  %679 = vmatpush.msra.mxu0 0.0
  %680 = vmatpush.msra.mxu0 0.0
  %681 = vmatpush.msra.mxu0 %v22
  %682 = vmatpush.msra.mxu0 %v21
  %683 = vmatpush.msra.mxu0 %v20
  %684 = vmatpush.msra.mxu0 %v19
  %685 = vmatmul.f32.gmra.mxu0 %v667
  %v686 = vpop.f32.mrf.mxu0
  %v687 = vadd.f32 %v664, %v686
  %688 = vdwg.mxu0
  %v689 = vtanh.pop %v687
  %690 = vmatpush.msra.mxu0 0.0
  %691 = vmatpush.msra.mxu0 0.0
  %692 = vmatpush.msra.mxu0 0.0
  %693 = vmatpush.msra.mxu0 0.0
  %694 = vmatpush.msra.mxu0 0.0
  %695 = vmatpush.msra.mxu0 0.0
  %696 = vmatpush.msra.mxu0 0.0
  %697 = vmatpush.msra.mxu0 0.0
  %698 = vmatpush.msra.mxu0 0.0
  %699 = vmatpush.msra.mxu0 0.0
  %700 = vmatpush.msra.mxu0 0.0
  %701 = vmatpush.msra.mxu0 0.0
  %702 = vmatpush.msra.mxu0 %v17
  %703 = vmatpush.msra.mxu0 %v16
  %704 = vmatpush.msra.mxu0 %v15
  %705 = vmatpush.msra.mxu0 %v14
  %706 = vmatmul.f32.gmra.mxu0 %v667
  %v707 = vpop.f32.mrf.mxu0
  %v708 = vadd.f32 0.0, %v707
  %709 = vdwg.mxu0
  %v710 = vadd.f32 %v120, %v708
  %v711 = vtanh.pop %v710
  %v713 = vsel %vm133, %v689, 0
  %715 = vmatpush.msra.mxu0 0.0
  %716 = vmatpush.msra.mxu0 0.0
  %717 = vmatpush.msra.mxu0 0.0
  %718 = vmatpush.msra.mxu0 0.0
  %719 = vmatpush.msra.mxu0 0.0
  %720 = vmatpush.msra.mxu0 0.0
  %721 = vmatpush.msra.mxu0 0.0
  %722 = vmatpush.msra.mxu0 0.0
  %723 = vmatpush.msra.mxu0 0.0
  %724 = vmatpush.msra.mxu0 0.0
  %725 = vmatpush.msra.mxu0 0.0
  %726 = vmatpush.msra.mxu0 0.0
  %727 = vmatpush.msra.mxu0 %v26
  %728 = vmatpush.msra.mxu0 %v25
  %729 = vmatpush.msra.mxu0 %v24
  %730 = vmatpush.msra.mxu0 %v23
  %731 = vmatmul.f32.gmra.mxu0 %v713
  %v732 = vpop.f32.mrf.mxu0
  %v733 = vadd.f32 %v159, %v732
  %734 = vdwg.mxu0
  %v736 = vsel %vm133, %v711, 0
  %738 = vmatpush.msra.mxu0 0.0
  %739 = vmatpush.msra.mxu0 0.0
  %740 = vmatpush.msra.mxu0 0.0
  %741 = vmatpush.msra.mxu0 0.0
  %742 = vmatpush.msra.mxu0 0.0
  %743 = vmatpush.msra.mxu0 0.0
  %744 = vmatpush.msra.mxu0 0.0
  %745 = vmatpush.msra.mxu0 0.0
  %746 = vmatpush.msra.mxu0 0.0
  %747 = vmatpush.msra.mxu0 0.0
  %748 = vmatpush.msra.mxu0 0.0
  %749 = vmatpush.msra.mxu0 0.0
  %750 = vmatpush.msra.mxu0 %v22
  %751 = vmatpush.msra.mxu0 %v21
  %752 = vmatpush.msra.mxu0 %v20
  %753 = vmatpush.msra.mxu0 %v19
  %754 = vmatmul.f32.gmra.mxu0 %v736
  %v755 = vpop.f32.mrf.mxu0
  %v756 = vadd.f32 %v733, %v755
  %757 = vdwg.mxu0
  %v758 = vtanh.pop %v756
  %759 = vmatpush.msra.mxu0 0.0
  %760 = vmatpush.msra.mxu0 0.0
  %761 = vmatpush.msra.mxu0 0.0
  %762 = vmatpush.msra.mxu0 0.0
  %763 = vmatpush.msra.mxu0 0.0
  %764 = vmatpush.msra.mxu0 0.0
  %765 = vmatpush.msra.mxu0 0.0
  %766 = vmatpush.msra.mxu0 0.0
  %767 = vmatpush.msra.mxu0 0.0
  %768 = vmatpush.msra.mxu0 0.0
  %769 = vmatpush.msra.mxu0 0.0
  %770 = vmatpush.msra.mxu0 0.0
  %771 = vmatpush.msra.mxu0 %v17
  %772 = vmatpush.msra.mxu0 %v16
  %773 = vmatpush.msra.mxu0 %v15
  %774 = vmatpush.msra.mxu0 %v14
  %775 = vmatmul.f32.gmra.mxu0 %v736
  %v776 = vpop.f32.mrf.mxu0
  %v777 = vadd.f32 0.0, %v776
  %778 = vdwg.mxu0
  %v779 = vadd.f32 %v123, %v777
  %v780 = vtanh.pop %v779
  %v782 = vsel %vm133, %v758, 0
  %784 = vmatpush.msra.mxu0 0.0
  %785 = vmatpush.msra.mxu0 0.0
  %786 = vmatpush.msra.mxu0 0.0
  %787 = vmatpush.msra.mxu0 0.0
  %788 = vmatpush.msra.mxu0 0.0
  %789 = vmatpush.msra.mxu0 0.0
  %790 = vmatpush.msra.mxu0 0.0
  %791 = vmatpush.msra.mxu0 0.0
  %792 = vmatpush.msra.mxu0 0.0
  %793 = vmatpush.msra.mxu0 0.0
  %794 = vmatpush.msra.mxu0 0.0
  %795 = vmatpush.msra.mxu0 0.0
  %796 = vmatpush.msra.mxu0 %v26
  %797 = vmatpush.msra.mxu0 %v25
  %798 = vmatpush.msra.mxu0 %v24
  %799 = vmatpush.msra.mxu0 %v23
  %800 = vmatmul.f32.gmra.mxu0 %v782
  %v801 = vpop.f32.mrf.mxu0
  %v802 = vadd.f32 %v159, %v801
  %803 = vdwg.mxu0
  %v805 = vsel %vm133, %v780, 0
  %807 = vmatpush.msra.mxu0 0.0
  %808 = vmatpush.msra.mxu0 0.0
  %809 = vmatpush.msra.mxu0 0.0
  %810 = vmatpush.msra.mxu0 0.0
  %811 = vmatpush.msra.mxu0 0.0
  %812 = vmatpush.msra.mxu0 0.0
  %813 = vmatpush.msra.mxu0 0.0
  %814 = vmatpush.msra.mxu0 0.0
  %815 = vmatpush.msra.mxu0 0.0
  %816 = vmatpush.msra.mxu0 0.0
  %817 = vmatpush.msra.mxu0 0.0
  %818 = vmatpush.msra.mxu0 0.0
  %819 = vmatpush.msra.mxu0 %v22
  %820 = vmatpush.msra.mxu0 %v21
  %821 = vmatpush.msra.mxu0 %v20
  %822 = vmatpush.msra.mxu0 %v19
  %823 = vmatmul.f32.gmra.mxu0 %v805
  %v824 = vpop.f32.mrf.mxu0
  %v825 = vadd.f32 %v802, %v824
  %826 = vdwg.mxu0
  %v827 = vtanh.pop %v825
  %828 = vmatpush.msra.mxu0 0.0
  %829 = vmatpush.msra.mxu0 0.0
  %830 = vmatpush.msra.mxu0 0.0
  %831 = vmatpush.msra.mxu0 0.0
  %832 = vmatpush.msra.mxu0 0.0
  %833 = vmatpush.msra.mxu0 0.0
  %834 = vmatpush.msra.mxu0 0.0
  %835 = vmatpush.msra.mxu0 0.0
  %836 = vmatpush.msra.mxu0 0.0
  %837 = vmatpush.msra.mxu0 0.0
  %838 = vmatpush.msra.mxu0 0.0
  %839 = vmatpush.msra.mxu0 0.0
  %840 = vmatpush.msra.mxu0 %v17
  %841 = vmatpush.msra.mxu0 %v16
  %842 = vmatpush.msra.mxu0 %v15
  %843 = vmatpush.msra.mxu0 %v14
  %844 = vmatmul.f32.gmra.mxu0 %v805
  %v845 = vpop.f32.mrf.mxu0
  %v846 = vadd.f32 0.0, %v845
  %847 = vdwg.mxu0
  %v848 = vadd.f32 %v126, %v846
  %v849 = vtanh.pop %v848
  %v851 = vsel %vm133, %v827, 0
  %853 = vmatpush.msra.mxu0 0.0
  %854 = vmatpush.msra.mxu0 0.0
  %855 = vmatpush.msra.mxu0 0.0
  %856 = vmatpush.msra.mxu0 0.0
  %857 = vmatpush.msra.mxu0 0.0
  %858 = vmatpush.msra.mxu0 0.0
  %859 = vmatpush.msra.mxu0 0.0
  %860 = vmatpush.msra.mxu0 0.0
  %861 = vmatpush.msra.mxu0 0.0
  %862 = vmatpush.msra.mxu0 0.0
  %863 = vmatpush.msra.mxu0 0.0
  %864 = vmatpush.msra.mxu0 0.0
  %865 = vmatpush.msra.mxu0 %v26
  %866 = vmatpush.msra.mxu0 %v25
  %867 = vmatpush.msra.mxu0 %v24
  %868 = vmatpush.msra.mxu0 %v23
  %869 = vmatmul.f32.gmra.mxu0 %v851
  %v870 = vpop.f32.mrf.mxu0
  %v871 = vadd.f32 %v159, %v870
  %872 = vdwg.mxu0
  %v874 = vsel %vm133, %v849, 0
  %876 = vmatpush.msra.mxu0 0.0
  %877 = vmatpush.msra.mxu0 0.0
  %878 = vmatpush.msra.mxu0 0.0
  %879 = vmatpush.msra.mxu0 0.0
  %880 = vmatpush.msra.mxu0 0.0
  %881 = vmatpush.msra.mxu0 0.0
  %882 = vmatpush.msra.mxu0 0.0
  %883 = vmatpush.msra.mxu0 0.0
  %884 = vmatpush.msra.mxu0 0.0
  %885 = vmatpush.msra.mxu0 0.0
  %886 = vmatpush.msra.mxu0 0.0
  %887 = vmatpush.msra.mxu0 0.0
  %888 = vmatpush.msra.mxu0 %v22
  %889 = vmatpush.msra.mxu0 %v21
  %890 = vmatpush.msra.mxu0 %v20
  %891 = vmatpush.msra.mxu0 %v19
  %892 = vmatmul.f32.gmra.mxu0 %v874
  %v893 = vpop.f32.mrf.mxu0
  %v894 = vadd.f32 %v871, %v893
  %895 = vdwg.mxu0
  %v896 = vtanh.pop %v894
  %897 = vmatpush.msra.mxu0 0.0
  %898 = vmatpush.msra.mxu0 0.0
  %899 = vmatpush.msra.mxu0 0.0
  %900 = vmatpush.msra.mxu0 0.0
  %901 = vmatpush.msra.mxu0 0.0
  %902 = vmatpush.msra.mxu0 0.0
  %903 = vmatpush.msra.mxu0 0.0
  %904 = vmatpush.msra.mxu0 0.0
  %905 = vmatpush.msra.mxu0 0.0
  %906 = vmatpush.msra.mxu0 0.0
  %907 = vmatpush.msra.mxu0 0.0
  %908 = vmatpush.msra.mxu0 0.0
  %909 = vmatpush.msra.mxu0 %v17
  %910 = vmatpush.msra.mxu0 %v16
  %911 = vmatpush.msra.mxu0 %v15
  %912 = vmatpush.msra.mxu0 %v14
  %913 = vmatmul.f32.gmra.mxu0 %v874
  %v914 = vpop.f32.mrf.mxu0
  %v915 = vadd.f32 0.0, %v914
  %916 = vdwg.mxu0
  %v917 = vadd.f32 %v129, %v915
  %v918 = vtanh.pop %v917
  %v920 = vsel %vm133, %v896, 0
  %922 = vmatpush.msra.mxu0 0.0
  %923 = vmatpush.msra.mxu0 0.0
  %924 = vmatpush.msra.mxu0 0.0
  %925 = vmatpush.msra.mxu0 0.0
  %926 = vmatpush.msra.mxu0 0.0
  %927 = vmatpush.msra.mxu0 0.0
  %928 = vmatpush.msra.mxu0 0.0
  %929 = vmatpush.msra.mxu0 0.0
  %930 = vmatpush.msra.mxu0 0.0
  %931 = vmatpush.msra.mxu0 0.0
  %932 = vmatpush.msra.mxu0 0.0
  %933 = vmatpush.msra.mxu0 0.0
  %934 = vmatpush.msra.mxu0 %v26
  %935 = vmatpush.msra.mxu0 %v25
  %936 = vmatpush.msra.mxu0 %v24
  %937 = vmatpush.msra.mxu0 %v23
  %938 = vmatmul.f32.gmra.mxu0 %v920
  %v939 = vpop.f32.mrf.mxu0
  %v940 = vadd.f32 %v159, %v939
  %941 = vdwg.mxu0
  %v943 = vsel %vm133, %v918, 0
  %945 = vmatpush.msra.mxu0 0.0
  %946 = vmatpush.msra.mxu0 0.0
  %947 = vmatpush.msra.mxu0 0.0
  %948 = vmatpush.msra.mxu0 0.0
  %949 = vmatpush.msra.mxu0 0.0
  %950 = vmatpush.msra.mxu0 0.0
  %951 = vmatpush.msra.mxu0 0.0
  %952 = vmatpush.msra.mxu0 0.0
  %953 = vmatpush.msra.mxu0 0.0
  %954 = vmatpush.msra.mxu0 0.0
  %955 = vmatpush.msra.mxu0 0.0
  %956 = vmatpush.msra.mxu0 0.0
  %957 = vmatpush.msra.mxu0 %v22
  %958 = vmatpush.msra.mxu0 %v21
  %959 = vmatpush.msra.mxu0 %v20
  %960 = vmatpush.msra.mxu0 %v19
  %961 = vmatmul.f32.gmra.mxu0 %v943
  %v962 = vpop.f32.mrf.mxu0
  %v963 = vadd.f32 %v940, %v962
  %964 = vdwg.mxu0
  %v965 = vtanh.pop %v963
  %v966 = vld [vmem:[%s1 + $0x98] sm:$0xff]
  %v967 = vld [vmem:[%s1 + $0xa0] sm:$0xff]
  %v968 = vld [vmem:[%s1 + $0xa8] sm:$0xff]
  %v969 = vld [vmem:[%s1 + $0xb0] sm:$0xff]
  %v970 = vld [vmem:[%s1 + $0xb8] sm:$0x1]
  %v971 = vperm.slane %v970, 0
  %v973 = vsel %vm133, %v965, 0
  %975 = vmatpush.msra.mxu0 0.0
  %976 = vmatpush.msra.mxu0 0.0
  %977 = vmatpush.msra.mxu0 0.0
  %978 = vmatpush.msra.mxu0 0.0
  %979 = vmatpush.msra.mxu0 0.0
  %980 = vmatpush.msra.mxu0 0.0
  %981 = vmatpush.msra.mxu0 0.0
  %982 = vmatpush.msra.mxu0 0.0
  %983 = vmatpush.msra.mxu0 0.0
  %984 = vmatpush.msra.mxu0 0.0
  %985 = vmatpush.msra.mxu0 0.0
  %986 = vmatpush.msra.mxu0 0.0
  %987 = vmatpush.msra.mxu0 %v969
  %988 = vmatpush.msra.mxu0 %v968
  %989 = vmatpush.msra.mxu0 %v967
  %990 = vmatpush.msra.mxu0 %v966
  %991 = vmatmul.f32.gmra.mxu0 %v973
  %v992 = vpop.f32.mrf.mxu0
  %v993 = vadd.f32 %v971, %v992
  %994 = vdwg.mxu0
  %vm995 = vcmask 7168
  %996 = vst.msk [vmem:[%s2] sm:$0xff] %vm995, %v993
  // Predicated region
  $region10: #{tpu_custom_call.1} parent=0 // pred_check
    _
  $region11: #{tpu_custom_call.1} parent=0 // pred_check_branch
    %998 = sbr.rel (0) target = $region13
  $region12: #{tpu_custom_call.1} parent=0 // pred_region
    _
  $region13: #{tpu_custom_call.1} parent=0 // pred_fallthru
    _
  // Predicated region
  $region14: #{tpu_custom_call.1} parent=0 // pred_check
    _
  $region15: #{tpu_custom_call.1} parent=0 // pred_check_branch
    %1000 = sbr.rel (0) target = $region17
  $region16: #{tpu_custom_call.1} parent=0 // pred_region
    _
  $region17: #{tpu_custom_call.1} parent=0 // pred_fallthru
    _

</llo_original>
